<compile_context>
chip_gen: v5e
topology: v5e:2x2
jax: 0.10.0
libtpu: 0.0.40
codegen_flags: <defaults>
</compile_context>

<pallas_src>
import functools
import math

import jax
import jax.numpy as jnp
from jax.experimental import pallas as pl
from jax.experimental.pallas import tpu as pltpu


# ----------------------------------------------------------------------------
# Kernel: out[:, 0, :]  = x_id * sub_w + sub_b
#         out[:, 1:, :] = feat @ W_stack + (pos + conv_b + time_b)
# ----------------------------------------------------------------------------
def _data_embedding_kernel(feat_ref, w_ref, sub_ref, posb_ref, out_ref, *, use_mxu):
    tb, L, KT = feat_ref.shape          # KT = 3 (conv taps) + F (time) + 1 (id)
    D = out_ref.shape[-1]

    if use_mxu:
        # K-small contraction on the MXU (review item): one weight push reused
        # across all TB*L rows.  The reshape is layout-preserving because 8 | L.
        f2 = feat_ref[...].reshape(tb * L, KT)
        main = jnp.dot(f2, w_ref[...], preferred_element_type=jnp.float32)
        main = main.reshape(tb, L, D) + posb_ref[...]          # only add on VPU
    else:
        # VPU fallback (L not a multiple of 8): unrolled broadcast-FMA chain
        # over the 3+F real feature columns (id column excluded).
        acc = feat_ref[:, :, 0:1] * w_ref[0:1, :]
        for k in range(1, KT - 1):
            acc = acc + feat_ref[:, :, k : k + 1] * w_ref[k : k + 1, :]
        main = acc + posb_ref[...]

    # SubjectEmbedding: Linear(1, D) on the scalar id (last feature column).
    sub = feat_ref[:, 0:1, KT - 1 : KT] * sub_ref[0:1, :] + sub_ref[1:2, :]

    # Fused torch.cat without a concat temporary: two direct slice stores.
    out_ref[:, 0:1, :] = sub.astype(out_ref.dtype)
    out_ref[:, 1:, :] = main.astype(out_ref.dtype)

    # TODO(synk): nn.Dropout(r_drop) is omitted (eval-mode identity).


# ----------------------------------------------------------------------------
# Generation-aware tiling / VMEM sizing helpers.
# ----------------------------------------------------------------------------
def _round_up(x, m):
    return -(-x // m) * m


def _vmem_capacity_bytes():
    # v7x: 64 MiB per TC; v5e/v6e: 128 MiB.  Conservative default if the query
    # is unavailable.
    try:
        return int(pltpu.get_tpu_info().vmem_capacity_bytes)
    except Exception:
        return 64 << 20


def _pick_tb(B, L, D, vmem_cap):
    """Batch elements per grid step.

    Targets a large double-buffered working set (~24 MiB => ~4-8 MiB output
    slabs) to amortize the ~0.35 us/step overhead; allows a single step when
    the whole batch fits (single-TC chips); otherwise prefers an even step
    count so both v7x TensorCores get equal work.
    """
    out_pb = _round_up(L + 1, 8) * _round_up(D, 128) * 4   # padded VMEM / batch / buffer
    feat_pb = _round_up(L, 8) * 128 * 4                    # feature tile (lane padded)
    per_batch = 2 * (out_pb + feat_pb)                     # x2: double buffering
    budget = min(max(vmem_cap // 2, 4 << 20), 24 << 20)
    tb = max(1, min(B, budget // per_batch))
    while B % tb:                                          # keep B divisible by tb
        tb -= 1
    steps = B // tb
    if steps > 1 and steps % 2:                            # prefer even #steps (v7x)
        for cand in range(tb, tb // 2, -1):
            if B % cand == 0 and (B // cand) % 2 == 0:
                tb = cand
                break
    return tb


# ----------------------------------------------------------------------------
# Wrapper
# ----------------------------------------------------------------------------
@functools.partial(jax.jit, static_argnames=("out_dtype",))
def data_embedding(x_id, x, x_mark, pos, conv_w3, conv_b, time_w, time_b,
                   sub_w, sub_b, out_dtype=jnp.float32):
    B, L, _ = x.shape
    F = x_mark.shape[-1]
    D = time_w.shape[-1]
    KT = 3 + F + 1                    # conv taps + time feats + subject id

    f32 = jnp.float32
    xv = x.astype(f32)

    # Feature assembly on tiny (B, L, KT) data (review: merge x / x_mark / id
    # into one operand; circular shifts are cheap wrapper ops on ~K/D of the
    # output traffic, the D-wide expansion stays in the kernel).
    feat = jnp.concatenate(
        [jnp.roll(xv, 1, axis=1),                                   # x[(t-1) mod L]
         xv,
         jnp.roll(xv, -1, axis=1),                                  # x[(t+1) mod L]
         x_mark.astype(f32),
         jnp.broadcast_to(x_id.astype(f32)[:, None, None], (B, L, 1))],
        axis=-1)                                                    # (B, L, KT)

    # Fold biases into the positional table; stack all row weights (the id
    # column gets a zero weight row so the MXU dot can include it harmlessly).
    pos_fused = pos[:L].astype(f32) + conv_b.astype(f32) + time_b.astype(f32)   # (L, D)
    w_stack = jnp.concatenate(
        [conv_w3.astype(f32), time_w.astype(f32), jnp.zeros((1, D), f32)], axis=0)  # (KT, D)
    sub_params = jnp.concatenate([sub_w.astype(f32), sub_b.astype(f32)], axis=0)    # (2, D)

    vmem_cap = _vmem_capacity_bytes()
    tb = _pick_tb(B, L, D, vmem_cap)
    use_mxu = (L % 8 == 0)            # layout-preserving (TB*L, KT) reshape needs 8 | L

    # Right-size the scoped-VMEM request from actual padded need (review: stay
    # well under v7x's 64 MiB/TC instead of a blanket 48 MiB).
    out_pb = _round_up(L + 1, 8) * _round_up(D, 128) * 4
    feat_pb = _round_up(L, 8) * 128 * 4
    resident = 2 * (_round_up(KT, 8) + _round_up(L, 8) + 8) * _round_up(D, 128) * 4
    need = 2 * (out_pb + feat_pb) * tb + resident
    vmem_limit = max(int(need * 1.25) + (2 << 20), 16 << 20)
    vmem_limit = min(vmem_limit, (vmem_cap * 3) // 4)

    kernel = functools.partial(_data_embedding_kernel, use_mxu=use_mxu)
    out = pl.pallas_call(
        kernel,
        grid=(B // tb,),
        in_specs=[
            pl.BlockSpec((tb, L, KT), lambda b: (b, 0, 0)),   # features
            pl.BlockSpec((KT, D), lambda b: (0, 0)),          # stacked weights
            pl.BlockSpec((2, D), lambda b: (0, 0)),           # subject [w; b]
            pl.BlockSpec((L, D), lambda b: (0, 0)),           # pos + conv_b + time_b
        ],
        out_specs=pl.BlockSpec((tb, L + 1, D), lambda b: (b, 0, 0)),
        out_shape=jax.ShapeDtypeStruct((B, L + 1, D), out_dtype),
        compiler_params=pltpu.CompilerParams(
            dimension_semantics=("parallel",),
            vmem_limit_bytes=int(vmem_limit),
        ),
    )(feat, w_stack, sub_params, pos_fused)
    return out                         # (B, L+1, D), row 0 = subject embedding


# ----------------------------------------------------------------------------
# Pure-JAX reference (mirrors the PyTorch forward).
# ----------------------------------------------------------------------------
def _reference(x_id, x, x_mark, pos, conv_w3, conv_b, time_w, time_b,
               sub_w, sub_b):
    xv = x[..., 0]                                        # (B, L)
    x_prev = jnp.roll(xv, 1, axis=1)
    x_next = jnp.roll(xv, -1, axis=1)
    conv = (x_prev[..., None] * conv_w3[0]
            + xv[..., None] * conv_w3[1]
            + x_next[..., None] * conv_w3[2]
            + conv_b)                                     # (B, L, D)
    temporal = jnp.dot(x_mark, time_w,
                       precision=jax.lax.Precision.HIGHEST) + time_b
    main = conv + pos[None] + temporal
    sub = x_id.astype(jnp.float32)[:, None, None] * sub_w[None] + sub_b[None]
    return jnp.concatenate([sub, main], axis=1)


# ----------------------------------------------------------------------------
# Parameter / positional-table construction (deterministic, in-script).
# ----------------------------------------------------------------------------
def make_positional_table(L, d_model):
    position = jnp.arange(L, dtype=jnp.float32)[:, None]
    div_term = jnp.exp(jnp.arange(0, d_model, 2, dtype=jnp.float32)
                       * -(math.log(10000.0) / d_model))
    pe_sin = jnp.sin(position * div_term)
    pe_cos = jnp.cos(position * div_term)
    pe = jnp.stack([pe_sin, pe_cos], axis=-1).reshape(L, d_model)   # interleave
    return pe.astype(jnp.float32)


def make_params(key, d_model, num_features):
    ks = jax.random.split(key, 8)
    conv_w = jax.random.normal(ks[0], (d_model, 1, 3), jnp.float32) * 0.1
    conv_b = jax.random.normal(ks[1], (d_model,), jnp.float32) * 0.1
    time_w = jax.random.normal(ks[2], (num_features, d_model), jnp.float32) * 0.1
    time_b = jax.random.normal(ks[3], (d_model,), jnp.float32) * 0.1
    sub_w = jax.random.normal(ks[4], (1, d_model), jnp.float32) * 0.1
    sub_b = jax.random.normal(ks[5], (d_model,), jnp.float32) * 0.1
    conv_w3 = jnp.transpose(conv_w[:, 0, :], (1, 0))      # (3, d_model): taps x chans
    return dict(
        conv_w3=conv_w3,
        conv_b=conv_b.reshape(1, d_model),
        time_w=time_w,
        time_b=time_b.reshape(1, d_model),
        sub_w=sub_w,
        sub_b=sub_b.reshape(1, d_model),
    )


if __name__ == "__main__":
    # Small demo shapes: D multiple of 128 (lane-dense stores), L multiple of 8
    # (exercises the MXU path).
    B, L, D, F = 4, 16, 128, 4

    key = jax.random.PRNGKey(0)
    k_id, k_x, k_mark, k_p = jax.random.split(key, 4)

    x_id = jax.random.randint(k_id, (B,), 0, 10)
    x = jax.random.normal(k_x, (B, L, 1), jnp.float32)
    x_mark = jax.random.normal(k_mark, (B, L, F), jnp.float32)

    params = make_params(k_p, D, F)
    pos = make_positional_table(L, D)

    out = data_embedding(x_id, x, x_mark, pos,
                         params["conv_w3"], params["conv_b"],
                         params["time_w"], params["time_b"],
                         params["sub_w"], params["sub_b"])
    out = jax.block_until_ready(out)

    ref = _reference(x_id, x, x_mark, pos,
                     params["conv_w3"], params["conv_b"],
                     params["time_w"], params["time_b"],
                     params["sub_w"], params["sub_b"])

    assert out.shape == (B, L + 1, D), out.shape
    # Tolerance covers possible bf16-pass rounding of the small-K MXU dot.
    assert jnp.allclose(out, ref, atol=5e-3, rtol=1e-3), "mismatch vs reference"
    print("KERNEL_OK")
</pallas_src>

<mosaic_0001>
module attributes {stable_mosaic.version = 11 : i64} {
  func.func @_data_embedding_kernel(%arg0: i32, %arg1: memref<4x16x8xf32, #tpu.memory_space<vmem>>, %arg2: memref<8x128xf32, #tpu.memory_space<vmem>>, %arg3: memref<2x128xf32, #tpu.memory_space<vmem>>, %arg4: memref<16x128xf32, #tpu.memory_space<vmem>>, %arg5: memref<4x17x128xf32, #tpu.memory_space<vmem>>) attributes {dimension_semantics = [#tpu.dimension_semantics<parallel>], iteration_bounds = array<i64: 1>, scalar_prefetch = 0 : i64, scratch_operands = 0 : i64, tpu.core_type = #tpu.core_type<tc>, window_params = [{transform_indices = @transform_0, window_bounds = array<i64: 4, 16, 8>}, {pipeline_mode = #tpu.pipeline_mode<synchronous>, transform_indices = @transform_1, window_bounds = array<i64: 8, 128>}, {pipeline_mode = #tpu.pipeline_mode<synchronous>, transform_indices = @transform_2, window_bounds = array<i64: 2, 128>}, {pipeline_mode = #tpu.pipeline_mode<synchronous>, transform_indices = @transform_3, window_bounds = array<i64: 16, 128>}, {transform_indices = @transform_4, window_bounds = array<i64: 4, 17, 128>}]} {
    %c0 = arith.constant 0 : index
    %c0_0 = arith.constant 0 : index
    %c0_1 = arith.constant 0 : index
    %0 = vector.load %arg1[%c0, %c0_0, %c0_1] : memref<4x16x8xf32, #tpu.memory_space<vmem>>, vector<4x16x8xf32>
    %1 = vector.shape_cast %0 : vector<4x16x8xf32> to vector<64x8xf32>
    %c0_2 = arith.constant 0 : index
    %c0_3 = arith.constant 0 : index
    %2 = vector.load %arg2[%c0_2, %c0_3] : memref<8x128xf32, #tpu.memory_space<vmem>>, vector<8x128xf32>
    %cst = arith.constant dense<0.000000e+00> : vector<64x128xf32>
    %3 = tpu.matmul %1, %2, %cst {dimension_numbers = #tpu.dot_dimension_numbers<[1], [0], [0], [1], [0, 0, 1, 1], [], []>} : vector<64x8xf32>, vector<8x128xf32>, vector<64x128xf32> -> vector<64x128xf32>
    %4 = vector.shape_cast %3 : vector<64x128xf32> to vector<4x16x128xf32>
    %c0_4 = arith.constant 0 : index
    %c0_5 = arith.constant 0 : index
    %5 = vector.load %arg4[%c0_4, %c0_5] : memref<16x128xf32, #tpu.memory_space<vmem>>, vector<16x128xf32>
    %6 = vector.shape_cast %5 : vector<16x128xf32> to vector<1x16x128xf32>
    %7 = vector.broadcast %6 : vector<1x16x128xf32> to vector<4x16x128xf32>
    %8 = arith.addf %4, %7 : vector<4x16x128xf32>
    %c0_6 = arith.constant 0 : index
    %c0_7 = arith.constant 0 : index
    %c7 = arith.constant 7 : index
    %9 = vector.load %arg1[%c0_6, %c0_7, %c7] : memref<4x16x8xf32, #tpu.memory_space<vmem>>, vector<4x1x1xf32>
    %c0_8 = arith.constant 0 : index
    %c0_9 = arith.constant 0 : index
    %10 = vector.load %arg3[%c0_8, %c0_9] : memref<2x128xf32, #tpu.memory_space<vmem>>, vector<1x128xf32>
    %11 = vector.shape_cast %10 : vector<1x128xf32> to vector<1x1x128xf32>
    %12 = vector.broadcast %9 : vector<4x1x1xf32> to vector<4x1x128xf32>
    %13 = vector.broadcast %11 : vector<1x1x128xf32> to vector<4x1x128xf32>
    %14 = arith.mulf %12, %13 : vector<4x1x128xf32>
    %c1 = arith.constant 1 : index
    %c0_10 = arith.constant 0 : index
    %15 = vector.load %arg3[%c1, %c0_10] : memref<2x128xf32, #tpu.memory_space<vmem>>, vector<1x128xf32>
    %16 = vector.shape_cast %15 : vector<1x128xf32> to vector<1x1x128xf32>
    %17 = vector.broadcast %16 : vector<1x1x128xf32> to vector<4x1x128xf32>
    %18 = arith.addf %14, %17 : vector<4x1x128xf32>
    %c0_11 = arith.constant 0 : index
    %c0_12 = arith.constant 0 : index
    %c0_13 = arith.constant 0 : index
    %19 = vector.load %arg5[%c0_11, %c0_12, %c0_13] : memref<4x17x128xf32, #tpu.memory_space<vmem>>, vector<4x1x128xf32>
    tpu.vector_store %arg5[%c0_11, %c0_12, %c0_13], %18 {strides = array<i32>} : memref<4x17x128xf32, #tpu.memory_space<vmem>>, vector<4x1x128xf32>,
    %c0_14 = arith.constant 0 : index
    %c1_15 = arith.constant 1 : index
    %c0_16 = arith.constant 0 : index
    %20 = vector.load %arg5[%c0_14, %c1_15, %c0_16] : memref<4x17x128xf32, #tpu.memory_space<vmem>>, vector<4x16x128xf32>
    tpu.vector_store %arg5[%c0_14, %c1_15, %c0_16], %8 {strides = array<i32>} : memref<4x17x128xf32, #tpu.memory_space<vmem>>, vector<4x16x128xf32>,
    return
  }
  func.func @transform_0(%arg0: i32) -> (i32, i32, i32) {
    %c0_i32 = arith.constant 0 : i32
    %c0_i32_0 = arith.constant 0 : i32
    %c0_i32_1 = arith.constant 0 : i32
    return %arg0, %c0_i32, %c0_i32_0 : i32, i32, i32
  }
  func.func @transform_1(%arg0: i32) -> (i32, i32) {
    %c0_i32 = arith.constant 0 : i32
    %c0_i32_0 = arith.constant 0 : i32
    %c0_i32_1 = arith.constant 0 : i32
    return %c0_i32, %c0_i32_0 : i32, i32
  }
  func.func @transform_2(%arg0: i32) -> (i32, i32) {
    %c0_i32 = arith.constant 0 : i32
    %c0_i32_0 = arith.constant 0 : i32
    %c0_i32_1 = arith.constant 0 : i32
    return %c0_i32, %c0_i32_0 : i32, i32
  }
  func.func @transform_3(%arg0: i32) -> (i32, i32) {
    %c0_i32 = arith.constant 0 : i32
    %c0_i32_0 = arith.constant 0 : i32
    %c0_i32_1 = arith.constant 0 : i32
    return %c0_i32, %c0_i32_0 : i32, i32
  }
  func.func @transform_4(%arg0: i32) -> (i32, i32, i32) {
    %c0_i32 = arith.constant 0 : i32
    %c0_i32_0 = arith.constant 0 : i32
    %c0_i32_1 = arith.constant 0 : i32
    return %arg0, %c0_i32, %c0_i32_0 : i32, i32, i32
  }
}

</mosaic_0001>

<llo_original>
// kernel: data_embedding.1
$region0: #{data_embedding.1}
  #allocation0 [shape = 'u32[]', space=smem, size = 0x4, offset = 0x4, fixed_abs, tag = 'smem constant byte address 0x4 - core index']
  #allocation1 [shape = 'u32[72,128]{1,0:T(1,128)}', space=vmem, size = 0x9000, scoped, tag = 'internal scratch']
  %s0 = inlined_call_operand.vmem [shape: f32[4,16,8], index: 0, kind: input, shape index: {}]
  %s1 = inlined_call_operand.vmem [shape: f32[8,128], index: 1, kind: input, shape index: {}]
  %s2 = inlined_call_operand.vmem [shape: f32[2,128], index: 2, kind: input, shape index: {}]
  %s3 = inlined_call_operand.vmem [shape: f32[16,128], index: 3, kind: input, shape index: {}]
  %s4 = inlined_call_operand.vmem [shape: f32[4,17,128], index: 4, kind: output, shape index: {}]
  %s5 = sld [smem:[#allocation0]]
  $region26: #{data_embedding.1} parent=0
    _
  %s7 = ssub.s32 1, %s5
  %s8 = scalar_select 0, %s7, %s5
  // Predicated region
  $region2: #{data_embedding.1} parent=0 // pred_check
    _
  $region3: #{data_embedding.1} parent=0 // pred_check_branch
    %10 = sbr.rel (0) target = $region5
  $region4: #{data_embedding.1} parent=0 // pred_region
    _
  $region5: #{data_embedding.1} parent=0 // pred_fallthru
    _
  // Predicated region
  $region6: #{data_embedding.1} parent=0 // pred_check
    _
  $region7: #{data_embedding.1} parent=0 // pred_check_branch
    %12 = sbr.rel (0) target = $region9
  $region8: #{data_embedding.1} parent=0 // pred_region
    _
  $region9: #{data_embedding.1} parent=0 // pred_fallthru
    _
  // Predicated region
  $region10: #{data_embedding.1} parent=0 // pred_check
    _
  $region11: #{data_embedding.1} parent=0 // pred_check_branch
    %14 = sbr.rel (0) target = $region13
  $region12: #{data_embedding.1} parent=0 // pred_region
    _
  $region13: #{data_embedding.1} parent=0 // pred_fallthru
    _
  // Predicated region
  $region14: #{data_embedding.1} parent=0 // pred_check
    _
  $region15: #{data_embedding.1} parent=0 // pred_check_branch
    %16 = sbr.rel (0) target = $region17
  $region16: #{data_embedding.1} parent=0 // pred_region
    _
  $region17: #{data_embedding.1} parent=0 // pred_fallthru
    _
  %v17 = vld [vmem:[%s0] sm:$0xff]
  %v18 = vld [vmem:[%s0 + $0x8] sm:$0xff]
  %v19 = vld [vmem:[%s0 + $0x10] sm:$0xff]
  %v20 = vld [vmem:[%s0 + $0x18] sm:$0xff]
  %v21 = vld [vmem:[%s0 + $0x20] sm:$0xff]
  %v22 = vld [vmem:[%s0 + $0x28] sm:$0xff]
  %v23 = vld [vmem:[%s0 + $0x30] sm:$0xff]
  %v24 = vld [vmem:[%s0 + $0x38] sm:$0xff]
  %v25 = vld [vmem:[%s1] sm:$0xff]
  %vm26 = vcmask 64512
  %v28 = vsel %vm26, %v17, 0
  %v31 = vsel %vm26, %v18, 0
  %v34 = vsel %vm26, %v19, 0
  %v37 = vsel %vm26, %v20, 0
  %v40 = vsel %vm26, %v21, 0
  %v43 = vsel %vm26, %v22, 0
  %v46 = vsel %vm26, %v23, 0
  %v49 = vsel %vm26, %v24, 0
  %51 = vmatpush.msra.mxu0 0.0
  %52 = vmatpush.msra.mxu0 0.0
  %53 = vmatpush.msra.mxu0 0.0
  %54 = vmatpush.msra.mxu0 0.0
  %55 = vmatpush.msra.mxu0 0.0
  %56 = vmatpush.msra.mxu0 0.0
  %57 = vmatpush.msra.mxu0 0.0
  %58 = vmatpush.msra.mxu0 0.0
  %59 = vmatpush.msra.mxu0 0.0
  %60 = vmatpush.msra.mxu0 0.0
  %61 = vmatpush.msra.mxu0 0.0
  %62 = vmatpush.msra.mxu0 0.0
  %63 = vmatpush.msra.mxu0 0.0
  %64 = vmatpush.msra.mxu0 0.0
  %65 = vmatpush.msra.mxu0 0.0
  %66 = vmatpush.msra.mxu0 %v25
  %67 = vmatmul.f32.gmra.mxu0 %v28
  %v68 = vpop.f32.mrf.mxu0
  %v69 = vadd.f32 0.0, %v68
  %70 = vmatmul.f32.gmra.mxu0 %v31
  %v71 = vpop.f32.mrf.mxu0
  %v72 = vadd.f32 0.0, %v71
  %73 = vmatmul.f32.gmra.mxu0 %v34
  %v74 = vpop.f32.mrf.mxu0
  %v75 = vadd.f32 0.0, %v74
  %76 = vmatmul.f32.gmra.mxu0 %v37
  %v77 = vpop.f32.mrf.mxu0
  %v78 = vadd.f32 0.0, %v77
  %79 = vmatmul.f32.gmra.mxu0 %v40
  %v80 = vpop.f32.mrf.mxu0
  %v81 = vadd.f32 0.0, %v80
  %82 = vmatmul.f32.gmra.mxu0 %v43
  %v83 = vpop.f32.mrf.mxu0
  %v84 = vadd.f32 0.0, %v83
  %85 = vmatmul.f32.gmra.mxu0 %v46
  %v86 = vpop.f32.mrf.mxu0
  %v87 = vadd.f32 0.0, %v86
  %88 = vmatmul.f32.gmra.mxu0 %v49
  %v89 = vpop.f32.mrf.mxu0
  %v90 = vadd.f32 0.0, %v89
  %91 = vdwg.mxu0
  %v92 = vld [vmem:[%s3] sm:$0xff]
  %v93 = vld [vmem:[%s3 + $0x8] sm:$0xff]
  %v94 = vadd.f32 %v69, %v92
  %v95 = vadd.f32 %v72, %v93
  %v96 = vadd.f32 %v75, %v92
  %v97 = vadd.f32 %v78, %v93
  %v98 = vadd.f32 %v81, %v92
  %v99 = vadd.f32 %v84, %v93
  %v100 = vadd.f32 %v87, %v92
  %v101 = vadd.f32 %v90, %v93
  %v102 = vld [vmem:[%s0] sm:$0x1]
  %v103 = vld [vmem:[%s0 + $0x10] sm:$0x1]
  %v104 = vld [vmem:[%s0 + $0x20] sm:$0x1]
  %v105 = vld [vmem:[%s0 + $0x30] sm:$0x1]
  %v106 = vld [vmem:[%s2] sm:$0x1]
  %108 = vset.pattern.permute.xlu0 7
  %109 = vperm.xlu0 %108, %v102
  %v110 = vpop.permute.xlu0 %109
  %113 = vset.pattern.permute.xlu0 7
  %114 = vperm.xlu0 %113, %v103
  %v115 = vpop.permute.xlu0 %114
  %118 = vset.pattern.permute.xlu0 7
  %119 = vperm.xlu0 %118, %v104
  %v120 = vpop.permute.xlu0 %119
  %123 = vset.pattern.permute.xlu0 7
  %124 = vperm.xlu0 %123, %v105
  %v125 = vpop.permute.xlu0 %124
  %v127 = vmul.f32 %v110, %v106
  %v128 = vmul.f32 %v115, %v106
  %v129 = vmul.f32 %v120, %v106
  %v130 = vmul.f32 %v125, %v106
  %v131 = vld [vmem:[%s2 + $0x1] sm:$0x1]
  %v132 = vadd.f32 %v127, %v131
  %v133 = vadd.f32 %v128, %v131
  %v134 = vadd.f32 %v129, %v131
  %v135 = vadd.f32 %v130, %v131
  %136 = vst [vmem:[%s4] sm:$0x1] %v132
  %137 = vst [vmem:[%s4 + $0x18] sm:$0x1] %v133
  %138 = vst [vmem:[%s4 + $0x30] sm:$0x1] %v134
  %139 = vst [vmem:[%s4 + $0x48] sm:$0x1] %v135
  %140 = vst [vmem:[%s4 + $0x1] sm:$0xff] %v94
  %141 = vst [vmem:[%s4 + $0x9] sm:$0xff] %v95
  %142 = vst [vmem:[%s4 + $0x19] sm:$0xff] %v96
  %143 = vst [vmem:[%s4 + $0x21] sm:$0xff] %v97
  %144 = vst [vmem:[%s4 + $0x31] sm:$0xff] %v98
  %145 = vst [vmem:[%s4 + $0x39] sm:$0xff] %v99
  %146 = vst [vmem:[%s4 + $0x49] sm:$0xff] %v100
  %147 = vst [vmem:[%s4 + $0x51] sm:$0xff] %v101
  // Predicated region
  $region18: #{data_embedding.1} parent=0 // pred_check
    _
  $region19: #{data_embedding.1} parent=0 // pred_check_branch
    %149 = sbr.rel (0) target = $region21
  $region20: #{data_embedding.1} parent=0 // pred_region
    _
  $region21: #{data_embedding.1} parent=0 // pred_fallthru
    _
  // Predicated region
  $region22: #{data_embedding.1} parent=0 // pred_check
    _
  $region23: #{data_embedding.1} parent=0 // pred_check_branch
    %151 = sbr.rel (0) target = $region25
  $region24: #{data_embedding.1} parent=0 // pred_region
    _
  $region25: #{data_embedding.1} parent=0 // pred_fallthru
    _

</llo_original>
